<compile_context>
chip_gen: v7x
topology: tpu7x:2x2x1
jax: 0.10.0
libtpu: 0.0.40
codegen_flags: <defaults>
</compile_context>

<pallas_src>
import math

import jax
import jax.numpy as jnp
from jax.experimental import pallas as pl
from jax.experimental.pallas import tpu as pltpu


LANE = 128   # lane width; all feature dims are padded to multiples of this
ALIGN = 16   # batch-tile sublane alignment valid for both f32 (8) and bf16 (16)


def _round_up(x, m):
    return (x + m - 1) // m * m


def _cdiv(a, b):
    return -(-a // b)


def _make_critic_kernel(num_agents, hidden, fuse_concat):
    """Kernel for one batch tile: fused agent-concat + fc1 + fc2 + value head."""

    def kernel(*refs):
        h_refs = refs[:num_agents]
        (w1_ref, b1_ref, w2_ref, b2_ref, w3_ref, b3_ref, o_ref) = refs[num_agents:]
        cdt = w1_ref.dtype   # bf16 compute dtype for MXU operands

        if fuse_concat:
            # hidden < 128: build the concatenated [tm, A*H] activation in
            # VMEM (never materialized in HBM), cast once, and run ONE MXU
            # matmul with full contraction depth K = A*H.
            x = jnp.concatenate([h[...] for h in h_refs], axis=1).astype(cdt)
            h1 = jnp.dot(x, w1_ref[...],
                         preferred_element_type=jnp.float32) + b1_ref[...]
        else:
            # hidden >= 128: each per-agent dot already fills the MXU depth;
            # accumulate into the f32 bias.  (Static sublane-aligned slices.)
            h1 = b1_ref[...]
            for a in range(num_agents):
                h1 = h1 + jnp.dot(h_refs[a][...].astype(cdt),
                                  w1_ref[a * hidden:(a + 1) * hidden, :],
                                  preferred_element_type=jnp.float32)

        h1 = jnp.maximum(h1, 0.0).astype(cdt)                     # lane-dense ReLU
        h2 = jnp.dot(h1, w2_ref[...],
                     preferred_element_type=jnp.float32) + b2_ref[...]
        h2 = jnp.maximum(h2, 0.0).astype(cdt)
        v = jnp.dot(h2, w3_ref[...],
                    preferred_element_type=jnp.float32) + b3_ref[...]
        o_ref[...] = v.astype(o_ref.dtype)                        # lane-dense bf16 store

    return kernel


def centralized_critic_forward(hidden_states, kparams, *, block_batch=1024,
                               xla_fast_path_max_batch=0, return_padded=False):
    """hidden_states: list of per-agent [B, H] f32 arrays (module's list input).

    kparams: output of prepare_params() — bf16 lane-padded weights, f32 biases.
    Returns [B, num_agents] bf16 values (cast to f32 on the consumer side if
    needed), or the padded [b_pad, 128] slab when return_padded=True.
    """
    w1, b1, w2, b2, w3, b3 = kparams
    kah, h1_pad = w1.shape              # [A*H, 2H_pad]
    h2_pad = w2.shape[1]
    n_pad = w3.shape[1]
    num_agents = len(hidden_states)
    hidden = hidden_states[0].shape[1]
    assert kah == num_agents * hidden
    B = hidden_states[0].shape[0]
    compute_dtype = w1.dtype

    # --- small-batch fast path (off by default): for tiny RL batches the
    # fused XLA dot chain beats pallas_call dispatch + sublane padding.
    if B <= xla_fast_path_max_batch:
        x = jnp.concatenate([jax.lax.stop_gradient(h) for h in hidden_states],
                            axis=1).astype(compute_dtype)
        h1 = jnp.maximum(jnp.dot(x, w1, preferred_element_type=jnp.float32) + b1, 0.0)
        h2 = jnp.maximum(jnp.dot(h1.astype(compute_dtype), w2,
                                 preferred_element_type=jnp.float32) + b2, 0.0)
        v = (jnp.dot(h2.astype(compute_dtype), w3,
                     preferred_element_type=jnp.float32) + b3).astype(jnp.bfloat16)
        return v if return_padded else v[:, :num_agents]

    # --- batch tiling -------------------------------------------------------
    b_aligned = _round_up(B, ALIGN)
    tm = min(_round_up(block_batch, ALIGN), b_aligned)
    # v7x megacore: with a single-step grid the second TensorCore idles; make
    # the grid at least 2 steps when the batch allows it.
    if b_aligned // tm < 2 and b_aligned >= 2 * ALIGN:
        tm = _round_up(_cdiv(b_aligned, 2), ALIGN)

    def _vmem_footprint(t):
        acts = num_agents * t * hidden * 4 * 2                        # f32 inputs, 2 bufs
        outs = t * n_pad * 2 * 2                                      # bf16 out, 2 bufs
        wgt = 2 * 2 * (kah * h1_pad + h1_pad * h2_pad + h2_pad * n_pad)  # bf16 weights
        bias = 2 * 4 * (h1_pad + h2_pad + n_pad)
        live = 4 * t * (kah + h1_pad + h2_pad + n_pad)                # in-kernel f32 temps
        return acts + outs + wgt + bias + live

    VMEM_BUDGET = 24 << 20   # conservative vs v7x's 32 MiB scoped default
    while _vmem_footprint(tm) > VMEM_BUDGET and tm > ALIGN:
        tm = max(ALIGN, _round_up(tm // 2, ALIGN))

    b_pad = _round_up(b_aligned, tm)
    grid = (b_pad // tm,)

    # Only pad when the batch is not already tile-aligned; no wrapper cast
    # (the bf16 cast is done in-kernel on VMEM tiles).
    hs = [jax.lax.stop_gradient(h) for h in hidden_states]   # detach(): forward no-op
    if b_pad != B:
        hs = [jnp.pad(h, ((0, b_pad - B), (0, 0))) for h in hs]

    in_specs = (
        [pl.BlockSpec((tm, hidden), lambda i: (i, 0)) for _ in range(num_agents)]
        + [
            # Constant index_maps -> weights/biases stay VMEM-resident across tiles.
            pl.BlockSpec(w1.shape, lambda i: (0, 0)),
            pl.BlockSpec(b1.shape, lambda i: (0, 0)),
            pl.BlockSpec(w2.shape, lambda i: (0, 0)),
            pl.BlockSpec(b2.shape, lambda i: (0, 0)),
            pl.BlockSpec(w3.shape, lambda i: (0, 0)),
            pl.BlockSpec(b3.shape, lambda i: (0, 0)),
        ]
    )

    flops = 2 * b_pad * (kah * h1_pad + h1_pad * h2_pad + h2_pad * n_pad)
    bytes_accessed = (
        num_agents * b_pad * hidden * 4
        + 2 * (kah * h1_pad + h1_pad * h2_pad + h2_pad * n_pad)
        + 4 * (h1_pad + h2_pad + n_pad)
        + b_pad * n_pad * 2
    )

    out = pl.pallas_call(
        _make_critic_kernel(num_agents, hidden, fuse_concat=hidden < LANE),
        out_shape=jax.ShapeDtypeStruct((b_pad, n_pad), jnp.bfloat16),
        grid=grid,
        in_specs=in_specs,
        out_specs=pl.BlockSpec((tm, n_pad), lambda i: (i, 0)),
        compiler_params=pltpu.CompilerParams(
            dimension_semantics=("parallel",),
            vmem_limit_bytes=int(min(64 << 20, max(32 << 20, 2 * _vmem_footprint(tm)))),
        ),
        cost_estimate=pl.CostEstimate(
            flops=int(flops), transcendentals=0, bytes_accessed=int(bytes_accessed)),
    )(*hs, w1, b1, w2, b2, w3, b3)

    if return_padded:
        # [b_pad, 128] slab: cols >= num_agents are exactly zero; rows >= B are
        # batch-padding garbage and must not be reduced over by consumers.
        return out
    return out[:B, :num_agents]


def init_params(key, num_agents, hidden_size):
    """PyTorch-style nn.Linear init (uniform +/- 1/sqrt(fan_in)); f32 weights
    stored as [in_features, out_features] (transpose of nn.Linear.weight)."""
    input_size = hidden_size * num_agents
    dims = [(input_size, hidden_size * 2),
            (hidden_size * 2, hidden_size),
            (hidden_size, num_agents)]
    params = []
    for fan_in, fan_out in dims:
        key, kw, kb = jax.random.split(key, 3)
        bound = 1.0 / math.sqrt(fan_in)
        w = jax.random.uniform(kw, (fan_in, fan_out), jnp.float32, -bound, bound)
        b = jax.random.uniform(kb, (1, fan_out), jnp.float32, -bound, bound)
        params.extend([w, b])
    return tuple(params)


def prepare_params(params, num_agents, hidden_size, compute_dtype=jnp.bfloat16):
    """One-time transform of the f32 [in, out] params into the kernel layout:
      * W1 kept as a single [A*H, 2H_pad] matrix (fused-concat fc1),
      * every output feature dim (2H, H, num_agents) zero-padded to 128 lanes
        so all intermediates and the value-head store are lane-dense,
      * weights cast to bf16 (MXU-native operands), biases kept f32.
    Zero padding keeps the math exact: padded activation columns are exactly 0."""
    w1, b1, w2, b2, w3, b3 = params
    h2x = hidden_size * 2
    a_h = num_agents * hidden_size
    h1_pad = _round_up(h2x, LANE)
    h2_pad = _round_up(hidden_size, LANE)
    n_pad = _round_up(num_agents, LANE)

    w1p = jnp.zeros((a_h, h1_pad), jnp.float32).at[:, :h2x].set(w1)
    b1p = jnp.zeros((1, h1_pad), jnp.float32).at[:, :h2x].set(b1)
    w2p = jnp.zeros((h1_pad, h2_pad), jnp.float32).at[:h2x, :hidden_size].set(w2)
    b2p = jnp.zeros((1, h2_pad), jnp.float32).at[:, :hidden_size].set(b2)
    w3p = jnp.zeros((h2_pad, n_pad), jnp.float32).at[:hidden_size, :num_agents].set(w3)
    b3p = jnp.zeros((1, n_pad), jnp.float32).at[:, :num_agents].set(b3)

    return (w1p.astype(compute_dtype), b1p,
            w2p.astype(compute_dtype), b2p,
            w3p.astype(compute_dtype), b3p)


def reference_forward(hidden_states, params):
    """Pure-JAX f32 reference matching the PyTorch module."""
    w1, b1, w2, b2, w3, b3 = params
    x = jnp.concatenate([jax.lax.stop_gradient(h) for h in hidden_states], axis=1)
    h1 = jnp.maximum(x @ w1 + b1, 0.0)
    h2 = jnp.maximum(h1 @ w2 + b2, 0.0)
    return h2 @ w3 + b3


if __name__ == "__main__":
    num_agents = 4
    hidden_size = 32
    batch = 2

    key = jax.random.PRNGKey(0)
    key, kx = jax.random.split(key)

    # Per-agent hidden states (the list input of the PyTorch module).
    hidden_states = [
        jax.random.normal(jax.random.fold_in(kx, a), (batch, hidden_size), jnp.float32)
        for a in range(num_agents)
    ]

    params = init_params(key, num_agents, hidden_size)           # f32 / torch layout
    kparams = prepare_params(params, num_agents, hidden_size)    # kernel layout (bf16)

    out = centralized_critic_forward(hidden_states, kparams)     # runs the Pallas kernel
    out = jax.block_until_ready(out)

    ref = reference_forward(hidden_states, params)
    assert out.shape == (batch, num_agents), out.shape
    # bf16 MXU operands + bf16 output vs a pure-f32 reference (deliberate choice
    # for an RL value head).
    assert jnp.allclose(out.astype(jnp.float32), ref, atol=5e-2, rtol=5e-2), (out, ref)

    print("KERNEL_OK")
</pallas_src>

<mosaic_0001>
module attributes {stable_mosaic.version = 11 : i64} {
  func.func @kernel(%arg0: i32, %arg1: memref<16x32xf32, #tpu.memory_space<vmem>>, %arg2: memref<16x32xf32, #tpu.memory_space<vmem>>, %arg3: memref<16x32xf32, #tpu.memory_space<vmem>>, %arg4: memref<16x32xf32, #tpu.memory_space<vmem>>, %arg5: memref<128x128xbf16, #tpu.memory_space<vmem>>, %arg6: memref<1x128xf32, #tpu.memory_space<vmem>>, %arg7: memref<128x128xbf16, #tpu.memory_space<vmem>>, %arg8: memref<1x128xf32, #tpu.memory_space<vmem>>, %arg9: memref<128x128xbf16, #tpu.memory_space<vmem>>, %arg10: memref<1x128xf32, #tpu.memory_space<vmem>>, %arg11: memref<16x128xbf16, #tpu.memory_space<vmem>>) attributes {dimension_semantics = [#tpu.dimension_semantics<parallel>], iteration_bounds = array<i64: 1>, scalar_prefetch = 0 : i64, scratch_operands = 0 : i64, tpu.core_type = #tpu.core_type<tc>, window_params = [{transform_indices = @transform_0, window_bounds = array<i64: 16, 32>}, {transform_indices = @transform_1, window_bounds = array<i64: 16, 32>}, {transform_indices = @transform_2, window_bounds = array<i64: 16, 32>}, {transform_indices = @transform_3, window_bounds = array<i64: 16, 32>}, {pipeline_mode = #tpu.pipeline_mode<synchronous>, transform_indices = @transform_4, window_bounds = array<i64: 128, 128>}, {pipeline_mode = #tpu.pipeline_mode<synchronous>, transform_indices = @transform_5, window_bounds = array<i64: 1, 128>}, {pipeline_mode = #tpu.pipeline_mode<synchronous>, transform_indices = @transform_6, window_bounds = array<i64: 128, 128>}, {pipeline_mode = #tpu.pipeline_mode<synchronous>, transform_indices = @transform_7, window_bounds = array<i64: 1, 128>}, {pipeline_mode = #tpu.pipeline_mode<synchronous>, transform_indices = @transform_8, window_bounds = array<i64: 128, 128>}, {pipeline_mode = #tpu.pipeline_mode<synchronous>, transform_indices = @transform_9, window_bounds = array<i64: 1, 128>}, {transform_indices = @transform_10, window_bounds = array<i64: 16, 128>}]} {
    %c0 = arith.constant 0 : index
    %c0_0 = arith.constant 0 : index
    %0 = vector.load %arg1[%c0, %c0_0] : memref<16x32xf32, #tpu.memory_space<vmem>>, vector<16x32xf32>
    %c0_1 = arith.constant 0 : index
    %c0_2 = arith.constant 0 : index
    %1 = vector.load %arg2[%c0_1, %c0_2] : memref<16x32xf32, #tpu.memory_space<vmem>>, vector<16x32xf32>
    %c0_3 = arith.constant 0 : index
    %c0_4 = arith.constant 0 : index
    %2 = vector.load %arg3[%c0_3, %c0_4] : memref<16x32xf32, #tpu.memory_space<vmem>>, vector<16x32xf32>
    %c0_5 = arith.constant 0 : index
    %c0_6 = arith.constant 0 : index
    %3 = vector.load %arg4[%c0_5, %c0_6] : memref<16x32xf32, #tpu.memory_space<vmem>>, vector<16x32xf32>
    %4 = tpu.concatenate %0, %1, %2, %3 in 1 : vector<16x32xf32>, vector<16x32xf32>, vector<16x32xf32>, vector<16x32xf32> -> vector<16x128xf32>
    %5 = arith.truncf %4 : vector<16x128xf32> to vector<16x128xbf16>
    %c0_7 = arith.constant 0 : index
    %c0_8 = arith.constant 0 : index
    %6 = vector.load %arg5[%c0_7, %c0_8] : memref<128x128xbf16, #tpu.memory_space<vmem>>, vector<128x128xbf16>
    %cst = arith.constant dense<0.000000e+00> : vector<16x128xf32>
    %7 = tpu.matmul %5, %6, %cst {dimension_numbers = #tpu.dot_dimension_numbers<[1], [0], [0], [1], [0, 0, 1, 1], [], []>} : vector<16x128xbf16>, vector<128x128xbf16>, vector<16x128xf32> -> vector<16x128xf32>
    %c0_9 = arith.constant 0 : index
    %c0_10 = arith.constant 0 : index
    %8 = vector.load %arg6[%c0_9, %c0_10] : memref<1x128xf32, #tpu.memory_space<vmem>>, vector<1x128xf32>
    %9 = vector.broadcast %8 : vector<1x128xf32> to vector<16x128xf32>
    %10 = arith.addf %7, %9 : vector<16x128xf32>
    %cst_11 = arith.constant 0.000000e+00 : f32
    %11 = vector.broadcast %cst_11 : f32 to vector<16x128xf32>
    %12 = arith.maximumf %10, %11 : vector<16x128xf32>
    %13 = arith.truncf %12 : vector<16x128xf32> to vector<16x128xbf16>
    %c0_12 = arith.constant 0 : index
    %c0_13 = arith.constant 0 : index
    %14 = vector.load %arg7[%c0_12, %c0_13] : memref<128x128xbf16, #tpu.memory_space<vmem>>, vector<128x128xbf16>
    %cst_14 = arith.constant dense<0.000000e+00> : vector<16x128xf32>
    %15 = tpu.matmul %13, %14, %cst_14 {dimension_numbers = #tpu.dot_dimension_numbers<[1], [0], [0], [1], [0, 0, 1, 1], [], []>} : vector<16x128xbf16>, vector<128x128xbf16>, vector<16x128xf32> -> vector<16x128xf32>
    %c0_15 = arith.constant 0 : index
    %c0_16 = arith.constant 0 : index
    %16 = vector.load %arg8[%c0_15, %c0_16] : memref<1x128xf32, #tpu.memory_space<vmem>>, vector<1x128xf32>
    %17 = vector.broadcast %16 : vector<1x128xf32> to vector<16x128xf32>
    %18 = arith.addf %15, %17 : vector<16x128xf32>
    %cst_17 = arith.constant 0.000000e+00 : f32
    %19 = vector.broadcast %cst_17 : f32 to vector<16x128xf32>
    %20 = arith.maximumf %18, %19 : vector<16x128xf32>
    %21 = arith.truncf %20 : vector<16x128xf32> to vector<16x128xbf16>
    %c0_18 = arith.constant 0 : index
    %c0_19 = arith.constant 0 : index
    %22 = vector.load %arg9[%c0_18, %c0_19] : memref<128x128xbf16, #tpu.memory_space<vmem>>, vector<128x128xbf16>
    %cst_20 = arith.constant dense<0.000000e+00> : vector<16x128xf32>
    %23 = tpu.matmul %21, %22, %cst_20 {dimension_numbers = #tpu.dot_dimension_numbers<[1], [0], [0], [1], [0, 0, 1, 1], [], []>} : vector<16x128xbf16>, vector<128x128xbf16>, vector<16x128xf32> -> vector<16x128xf32>
    %c0_21 = arith.constant 0 : index
    %c0_22 = arith.constant 0 : index
    %24 = vector.load %arg10[%c0_21, %c0_22] : memref<1x128xf32, #tpu.memory_space<vmem>>, vector<1x128xf32>
    %25 = vector.broadcast %24 : vector<1x128xf32> to vector<16x128xf32>
    %26 = arith.addf %23, %25 : vector<16x128xf32>
    %27 = arith.truncf %26 : vector<16x128xf32> to vector<16x128xbf16>
    %c0_23 = arith.constant 0 : index
    %c0_24 = arith.constant 0 : index
    %28 = vector.load %arg11[%c0_23, %c0_24] : memref<16x128xbf16, #tpu.memory_space<vmem>>, vector<16x128xbf16>
    tpu.vector_store %arg11[%c0_23, %c0_24], %27 {strides = array<i32>} : memref<16x128xbf16, #tpu.memory_space<vmem>>, vector<16x128xbf16>,
    return
  }
  func.func @transform_0(%arg0: i32) -> (i32, i32) {
    %c0_i32 = arith.constant 0 : i32
    %c0_i32_0 = arith.constant 0 : i32
    return %arg0, %c0_i32 : i32, i32
  }
  func.func @transform_1(%arg0: i32) -> (i32, i32) {
    %c0_i32 = arith.constant 0 : i32
    %c0_i32_0 = arith.constant 0 : i32
    return %arg0, %c0_i32 : i32, i32
  }
  func.func @transform_2(%arg0: i32) -> (i32, i32) {
    %c0_i32 = arith.constant 0 : i32
    %c0_i32_0 = arith.constant 0 : i32
    return %arg0, %c0_i32 : i32, i32
  }
  func.func @transform_3(%arg0: i32) -> (i32, i32) {
    %c0_i32 = arith.constant 0 : i32
    %c0_i32_0 = arith.constant 0 : i32
    return %arg0, %c0_i32 : i32, i32
  }
  func.func @transform_4(%arg0: i32) -> (i32, i32) {
    %c0_i32 = arith.constant 0 : i32
    %c0_i32_0 = arith.constant 0 : i32
    %c0_i32_1 = arith.constant 0 : i32
    return %c0_i32, %c0_i32_0 : i32, i32
  }
  func.func @transform_5(%arg0: i32) -> (i32, i32) {
    %c0_i32 = arith.constant 0 : i32
    %c0_i32_0 = arith.constant 0 : i32
    %c0_i32_1 = arith.constant 0 : i32
    return %c0_i32, %c0_i32_0 : i32, i32
  }
  func.func @transform_6(%arg0: i32) -> (i32, i32) {
    %c0_i32 = arith.constant 0 : i32
    %c0_i32_0 = arith.constant 0 : i32
    %c0_i32_1 = arith.constant 0 : i32
    return %c0_i32, %c0_i32_0 : i32, i32
  }
  func.func @transform_7(%arg0: i32) -> (i32, i32) {
    %c0_i32 = arith.constant 0 : i32
    %c0_i32_0 = arith.constant 0 : i32
    %c0_i32_1 = arith.constant 0 : i32
    return %c0_i32, %c0_i32_0 : i32, i32
  }
  func.func @transform_8(%arg0: i32) -> (i32, i32) {
    %c0_i32 = arith.constant 0 : i32
    %c0_i32_0 = arith.constant 0 : i32
    %c0_i32_1 = arith.constant 0 : i32
    return %c0_i32, %c0_i32_0 : i32, i32
  }
  func.func @transform_9(%arg0: i32) -> (i32, i32) {
    %c0_i32 = arith.constant 0 : i32
    %c0_i32_0 = arith.constant 0 : i32
    %c0_i32_1 = arith.constant 0 : i32
    return %c0_i32, %c0_i32_0 : i32, i32
  }
  func.func @transform_10(%arg0: i32) -> (i32, i32) {
    %c0_i32 = arith.constant 0 : i32
    %c0_i32_0 = arith.constant 0 : i32
    return %arg0, %c0_i32 : i32, i32
  }
}

</mosaic_0001>

<llo_original>
// kernel: tpu_custom_call.1
$region0: #{tpu_custom_call.1}
  #allocation0 [shape = 'u32[]', space=smem, size = 0x4, offset = 0x4, fixed_abs, tag = 'smem constant byte address 0x4 - core index']
  #allocation1 [shape = 'u32[144,128]{1,0:T(1,128)}', space=vmem, size = 0x12000, scoped, tag = 'internal scratch']
  %s0 = inlined_call_operand.hbm [shape: f32[16,32], index: 0, kind: input, shape index: {}]
  %s1 = inlined_call_operand.hbm [shape: f32[16,32], index: 1, kind: input, shape index: {}]
  %s2 = inlined_call_operand.hbm [shape: f32[16,32], index: 2, kind: input, shape index: {}]
  %s3 = inlined_call_operand.hbm [shape: f32[16,32], index: 3, kind: input, shape index: {}]
  %s4 = inlined_call_operand.hbm [shape: bf16[128,128], index: 4, kind: input, shape index: {}]
  %s5 = inlined_call_operand.vmem [shape: f32[1,128], index: 5, kind: input, shape index: {}]
  %s6 = inlined_call_operand.hbm [shape: bf16[128,128], index: 6, kind: input, shape index: {}]
  %s7 = inlined_call_operand.vmem [shape: f32[1,128], index: 7, kind: input, shape index: {}]
  %s8 = inlined_call_operand.hbm [shape: bf16[128,128], index: 8, kind: input, shape index: {}]
  %s9 = inlined_call_operand.vmem [shape: f32[1,128], index: 9, kind: input, shape index: {}]
  %s10 = inlined_call_operand.hbm [shape: bf16[16,128], index: 10, kind: output, shape index: {}]
  %s11 = sld [smem:[#allocation0]]
  $region78: #{tpu_custom_call.1} parent=0
    _
  %s13 = ssub.s32 1, %s11
  %s14 = scalar_select 0, %s13, %s11
  $region1: #{tpu_custom_call.1} parent=0
    #allocation2 [shape = 'u8[8192]{0}', space=vmem, size = 0x2000, scoped, tag = 'input window, operand 0, single buffered']
    #allocation3 [shape = 's32[1]{0}', space=sflag, size = 0x4, scoped, tag = 'scoped memory for tpu_custom_call.1']
    #allocation4 [shape = 's32[1]{0}', space=sflag, size = 0x4, scoped, tag = 'scoped memory for tpu_custom_call.1']
    #allocation5 [shape = 'u8[8192]{0}', space=vmem, size = 0x2000, scoped, tag = 'input window, operand 1, single buffered']
    #allocation6 [shape = 's32[1]{0}', space=sflag, size = 0x4, scoped, tag = 'scoped memory for tpu_custom_call.1']
    #allocation7 [shape = 'u8[8192]{0}', space=vmem, size = 0x2000, scoped, tag = 'input window, operand 2, single buffered']
    #allocation8 [shape = 'u8[8192]{0}', space=vmem, size = 0x2000, scoped, tag = 'input window, operand 3, single buffered']
    #allocation9 [shape = 's32[1]{0}', space=sflag, size = 0x4, scoped, tag = 'scoped memory for tpu_custom_call.1']
    #allocation10 [shape = 'u8[32768]{0}', space=vmem, size = 0x8000, scoped, tag = 'input window, operand 4, single buffered']
    #allocation11 [shape = 'u8[32768]{0}', space=vmem, size = 0x8000, scoped, tag = 'input window, operand 6, single buffered']
    #allocation12 [shape = 's32[1]{0}', space=sflag, size = 0x4, scoped, tag = 'scoped memory for tpu_custom_call.1']
    #allocation13 [shape = 'u8[32768]{0}', space=vmem, size = 0x8000, scoped, tag = 'input window, operand 8, single buffered']
    #allocation14 [shape = 'u8[4096]{0}', space=vmem, size = 0x1000, scoped, tag = 'output window, operand 0, single buffered']
    %15 = vsyncpa [#allocation3], 0
    %16 = vsyncpa [#allocation6], 0
    %17 = vsyncpa [#allocation9], 0
    %18 = vsyncpa [#allocation12], 0
    %19 = vsyncpa [#allocation4], 0
    // Predicated region
    $region2: #{tpu_custom_call.1} parent=1 // pred_check
      _
    $region3: #{tpu_custom_call.1} parent=1 // pred_check_branch
      %21 = sbr.rel (0) target = $region5
    $region4: #{tpu_custom_call.1} parent=1 // pred_region
      %s23 = ssub.s32 256, 256
      %24 = vsyncadd [#allocation3], %s23
      %s25 = sshll.u32 [#allocation2], 4
      %s26 = int_to_ptr.vmem [resolvable:$true] %s25
      %31 = dma.hbm_to_vmem [thread:$0]  %s0, 256, %s26, [#allocation3], 128, 128, 8
    $region5: #{tpu_custom_call.1} parent=1 // pred_fallthru
      _
    // Predicated region
    $region6: #{tpu_custom_call.1} parent=1 // pred_check
      _
    $region7: #{tpu_custom_call.1} parent=1 // pred_check_branch
      %33 = sbr.rel (0) target = $region9
    $region8: #{tpu_custom_call.1} parent=1 // pred_region
      %s35 = ssub.s32 256, 256
      %36 = vsyncadd [#allocation6], %s35
      %s37 = sshll.u32 [#allocation5], 4
      %s38 = int_to_ptr.vmem [resolvable:$true] %s37
      %43 = dma.hbm_to_vmem [thread:$0]  %s1, 256, %s38, [#allocation6], 128, 128, 8
    $region9: #{tpu_custom_call.1} parent=1 // pred_fallthru
      _
    // Predicated region
    $region10: #{tpu_custom_call.1} parent=1 // pred_check
      _
    $region11: #{tpu_custom_call.1} parent=1 // pred_check_branch
      %45 = sbr.rel (0) target = $region13
    $region12: #{tpu_custom_call.1} parent=1 // pred_region
      %s47 = ssub.s32 256, 256
      %48 = vsyncadd [#allocation6], %s47
      %s49 = sshll.u32 [#allocation7], 4
      %s50 = int_to_ptr.vmem [resolvable:$true] %s49
      %55 = dma.hbm_to_vmem [thread:$0]  %s2, 256, %s50, [#allocation6], 128, 128, 8
    $region13: #{tpu_custom_call.1} parent=1 // pred_fallthru
      _
    // Predicated region
    $region14: #{tpu_custom_call.1} parent=1 // pred_check
      _
    $region15: #{tpu_custom_call.1} parent=1 // pred_check_branch
      %57 = sbr.rel (0) target = $region17
    $region16: #{tpu_custom_call.1} parent=1 // pred_region
      %s59 = ssub.s32 256, 256
      %60 = vsyncadd [#allocation9], %s59
      %s61 = sshll.u32 [#allocation8], 4
      %s62 = int_to_ptr.vmem [resolvable:$true] %s61
      %67 = dma.hbm_to_vmem [thread:$0]  %s3, 256, %s62, [#allocation9], 128, 128, 8
    $region17: #{tpu_custom_call.1} parent=1 // pred_fallthru
      _
    // Predicated region
    $region18: #{tpu_custom_call.1} parent=1 // pred_check
      _
    $region19: #{tpu_custom_call.1} parent=1 // pred_check_branch
      %69 = sbr.rel (0) target = $region21
    $region20: #{tpu_custom_call.1} parent=1 // pred_region
      %s71 = ssub.s32 1024, 1024
      %72 = vsyncadd [#allocation9], %s71
      %s73 = sshll.u32 [#allocation10], 4
      %s74 = int_to_ptr.vmem [resolvable:$true] %s73
      %79 = dma.hbm_to_vmem [thread:$0]  %s4, 1024, %s74, [#allocation9], 64, 64, 4
    $region21: #{tpu_custom_call.1} parent=1 // pred_fallthru
      _
    // Predicated region
    $region22: #{tpu_custom_call.1} parent=1 // pred_check
      _
    $region23: #{tpu_custom_call.1} parent=1 // pred_check_branch
      %81 = sbr.rel (0) target = $region25
    $region24: #{tpu_custom_call.1} parent=1 // pred_region
      _
    $region25: #{tpu_custom_call.1} parent=1 // pred_fallthru
      _
    // Predicated region
    $region26: #{tpu_custom_call.1} parent=1 // pred_check
      _
    $region27: #{tpu_custom_call.1} parent=1 // pred_check_branch
      %83 = sbr.rel (0) target = $region29
    $region28: #{tpu_custom_call.1} parent=1 // pred_region
      %s85 = ssub.s32 1024, 1024
      %86 = vsyncadd [#allocation12], %s85
      %s87 = sshll.u32 [#allocation11], 4
      %s88 = int_to_ptr.vmem [resolvable:$true] %s87
      %93 = dma.hbm_to_vmem [thread:$0]  %s6, 1024, %s88, [#allocation12], 64, 64, 4
    $region29: #{tpu_custom_call.1} parent=1 // pred_fallthru
      _
    // Predicated region
    $region30: #{tpu_custom_call.1} parent=1 // pred_check
      _
    $region31: #{tpu_custom_call.1} parent=1 // pred_check_branch
      %95 = sbr.rel (0) target = $region33
    $region32: #{tpu_custom_call.1} parent=1 // pred_region
      _
    $region33: #{tpu_custom_call.1} parent=1 // pred_fallthru
      _
    // Predicated region
    $region34: #{tpu_custom_call.1} parent=1 // pred_check
      _
    $region35: #{tpu_custom_call.1} parent=1 // pred_check_branch
      %97 = sbr.rel (0) target = $region37
    $region36: #{tpu_custom_call.1} parent=1 // pred_region
      %s99 = ssub.s32 1024, 1024
      %100 = vsyncadd [#allocation12], %s99
      %s101 = sshll.u32 [#allocation13], 4
      %s102 = int_to_ptr.vmem [resolvable:$true] %s101
      %107 = dma.hbm_to_vmem [thread:$0]  %s8, 1024, %s102, [#allocation12], 64, 64, 4
    $region37: #{tpu_custom_call.1} parent=1 // pred_fallthru
      _
    // Predicated region
    $region38: #{tpu_custom_call.1} parent=1 // pred_check
      _
    $region39: #{tpu_custom_call.1} parent=1 // pred_check_branch
      %109 = sbr.rel (0) target = $region41
    $region40: #{tpu_custom_call.1} parent=1 // pred_region
      _
    $region41: #{tpu_custom_call.1} parent=1 // pred_fallthru
      _
    // Predicated region
    $region42: #{tpu_custom_call.1} parent=1 // pred_check
      _
    $region43: #{tpu_custom_call.1} parent=1 // pred_check_branch
      %111 = sbr.rel (0) target = $region45
    $region44: #{tpu_custom_call.1} parent=1 // pred_region
      %112 = dma.done [#allocation3], 256
    $region45: #{tpu_custom_call.1} parent=1 // pred_fallthru
      _
    // Predicated region
    $region46: #{tpu_custom_call.1} parent=1 // pred_check
      _
    $region47: #{tpu_custom_call.1} parent=1 // pred_check_branch
      %114 = sbr.rel (0) target = $region49
    $region48: #{tpu_custom_call.1} parent=1 // pred_region
      %115 = dma.done [#allocation6], 256
    $region49: #{tpu_custom_call.1} parent=1 // pred_fallthru
      _
    // Predicated region
    $region50: #{tpu_custom_call.1} parent=1 // pred_check
      _
    $region51: #{tpu_custom_call.1} parent=1 // pred_check_branch
      %117 = sbr.rel (0) target = $region53
    $region52: #{tpu_custom_call.1} parent=1 // pred_region
      %118 = dma.done [#allocation6], 256
    $region53: #{tpu_custom_call.1} parent=1 // pred_fallthru
      _
    // Predicated region
    $region54: #{tpu_custom_call.1} parent=1 // pred_check
      _
    $region55: #{tpu_custom_call.1} parent=1 // pred_check_branch
      %120 = sbr.rel (0) target = $region57
    $region56: #{tpu_custom_call.1} parent=1 // pred_region
      %121 = dma.done [#allocation9], 256
    $region57: #{tpu_custom_call.1} parent=1 // pred_fallthru
      _
    // Predicated region
    $region58: #{tpu_custom_call.1} parent=1 // pred_check
      _
    $region59: #{tpu_custom_call.1} parent=1 // pred_check_branch
      %123 = sbr.rel (0) target = $region61
    $region60: #{tpu_custom_call.1} parent=1 // pred_region
      %124 = dma.done [#allocation9], 1024
    $region61: #{tpu_custom_call.1} parent=1 // pred_fallthru
      _
    // Predicated region
    $region62: #{tpu_custom_call.1} parent=1 // pred_check
      _
    $region63: #{tpu_custom_call.1} parent=1 // pred_check_branch
      %126 = sbr.rel (0) target = $region65
    $region64: #{tpu_custom_call.1} parent=1 // pred_region
      %127 = dma.done [#allocation12], 1024
    $region65: #{tpu_custom_call.1} parent=1 // pred_fallthru
      _
    // Predicated region
    $region66: #{tpu_custom_call.1} parent=1 // pred_check
      _
    $region67: #{tpu_custom_call.1} parent=1 // pred_check_branch
      %129 = sbr.rel (0) target = $region69
    $region68: #{tpu_custom_call.1} parent=1 // pred_region
      %130 = dma.done [#allocation12], 1024
    $region69: #{tpu_custom_call.1} parent=1 // pred_fallthru
      _
    %v132 = vld [vmem:[#allocation2] sm:$0xff]
    %v133 = vld [vmem:[#allocation2 + $0x8] sm:$0xff]
    %v134 = vld [vmem:[#allocation5] sm:$0xff]
    %v135 = vld [vmem:[#allocation5 + $0x8] sm:$0xff]
    %v136 = vld [vmem:[#allocation7] sm:$0xff]
    %v137 = vld [vmem:[#allocation7 + $0x8] sm:$0xff]
    %v138 = vld [vmem:[#allocation8] sm:$0xff]
    %v139 = vld [vmem:[#allocation8 + $0x8] sm:$0xff]
    %142 = vrot.lane.b32.xlu0 %v134, 32
    %v143 = vpop.permute.xlu0 %142
    %144 = vrot.lane.b32.xlu0 %v135, 32
    %v145 = vpop.permute.xlu0 %144
    %150 = vrot.lane.b32.xlu0 %v136, 64
    %v151 = vpop.permute.xlu0 %150
    %152 = vrot.lane.b32.xlu0 %v137, 64
    %v153 = vpop.permute.xlu0 %152
    %158 = vrot.lane.b32.xlu0 %v138, 96
    %v159 = vpop.permute.xlu0 %158
    %160 = vrot.lane.b32.xlu0 %v139, 96
    %v161 = vpop.permute.xlu0 %160
    %vm164 = vcmask 261120
    %v165 = vsel %vm164, %v132, %v143
    %v166 = vsel %vm164, %v133, %v145
    %vm167 = vcmask 523264
    %v168 = vsel %vm167, %v165, %v151
    %v169 = vsel %vm167, %v166, %v153
    %vm170 = vcmask 785408
    %v171 = vsel %vm170, %v168, %v159
    %v172 = vsel %vm170, %v169, %v161
    %v173 = vpack.c.bf16 %v172, %v171
    %v174 = vld [vmem:[#allocation10] sm:$0xf]
    %v175 = vld [vmem:[#allocation10 + $0x4] sm:$0xf]
    %v176 = vld [vmem:[#allocation10 + $0x8] sm:$0xf]
    %v177 = vld [vmem:[#allocation10 + $0xc] sm:$0xf]
    %v178 = vld [vmem:[#allocation10 + $0x10] sm:$0xf]
    %v179 = vld [vmem:[#allocation10 + $0x14] sm:$0xf]
    %v180 = vld [vmem:[#allocation10 + $0x18] sm:$0xf]
    %v181 = vld [vmem:[#allocation10 + $0x1c] sm:$0xf]
    %v182 = vld [vmem:[#allocation10 + $0x20] sm:$0xf]
    %v183 = vld [vmem:[#allocation10 + $0x24] sm:$0xf]
    %v184 = vld [vmem:[#allocation10 + $0x28] sm:$0xf]
    %v185 = vld [vmem:[#allocation10 + $0x2c] sm:$0xf]
    %v186 = vld [vmem:[#allocation10 + $0x30] sm:$0xf]
    %v187 = vld [vmem:[#allocation10 + $0x34] sm:$0xf]
    %v188 = vld [vmem:[#allocation10 + $0x38] sm:$0xf]
    %v189 = vld [vmem:[#allocation10 + $0x3c] sm:$0xf]
    %v190 = vld [vmem:[%s5] sm:$0x1]
    %v192 = vlaneseq
    %v193 = vshrl.u32 %v192, 7
    %v194 = vsub.s32 0, %v193
    %v195 = vrot.slane %v190, %v194
    %v213 = vunpack.c.l.b16 %v174
    %v214 = vunpack.c.l.b16 %v175
    %v215 = vunpack.c.l.b16 %v176
    %v216 = vunpack.c.l.b16 %v177
    %v217 = vunpack.c.l.b16 %v178
    %v218 = vunpack.c.l.b16 %v179
    %v219 = vunpack.c.l.b16 %v180
    %v220 = vunpack.c.l.b16 %v181
    %v221 = vunpack.c.l.b16 %v182
    %v222 = vunpack.c.l.b16 %v183
    %v223 = vunpack.c.l.b16 %v184
    %v224 = vunpack.c.l.b16 %v185
    %v225 = vunpack.c.l.b16 %v186
    %v226 = vunpack.c.l.b16 %v187
    %v227 = vunpack.c.l.b16 %v188
    %v228 = vunpack.c.l.b16 %v189
    %v229 = vpack.c.b16 %v214, %v213
    %v230 = vpack.c.b16 %v216, %v215
    %v231 = vpack.c.b16 %v218, %v217
    %v232 = vpack.c.b16 %v220, %v219
    %v233 = vpack.c.b16 %v222, %v221
    %v234 = vpack.c.b16 %v224, %v223
    %v235 = vpack.c.b16 %v226, %v225
    %v236 = vpack.c.b16 %v228, %v227
    %245 = vmatprep.subr.bf16.mxu0 0
    %246 = vmatpush1.bf16.msra.mxu0 %v229
    %247 = vmatprep.subr.bf16.mxu0 0
    %248 = vmatpush1.bf16.msra.mxu0 %v230
    %249 = vmatprep.subr.bf16.mxu0 0
    %250 = vmatpush1.bf16.msra.mxu0 %v231
    %251 = vmatprep.subr.bf16.mxu0 0
    %252 = vmatpush1.bf16.msra.mxu0 %v232
    %253 = vmatprep.subr.bf16.mxu0 0
    %254 = vmatpush1.bf16.msra.mxu0 %v233
    %255 = vmatprep.subr.bf16.mxu0 0
    %256 = vmatpush1.bf16.msra.mxu0 %v234
    %257 = vmatprep.subr.bf16.mxu0 0
    %258 = vmatpush1.bf16.msra.mxu0 %v235
    %259 = vmatprep.subr.bf16.mxu0 0
    %260 = vmatpush1.bf16.msra.mxu0 %v236
    %261 = vmatprep.subr.bf16.mxu0 0
    %262 = vmatpush1.bf16.msra.mxu0 0
    %263 = vmatprep.subr.bf16.mxu0 0
    %264 = vmatpush1.bf16.msra.mxu0 0
    %265 = vmatprep.subr.bf16.mxu0 0
    %266 = vmatpush1.bf16.msra.mxu0 0
    %267 = vmatprep.subr.bf16.mxu0 0
    %268 = vmatpush1.bf16.msra.mxu0 0
    %269 = vmatprep.subr.bf16.mxu0 0
    %270 = vmatpush1.bf16.msra.mxu0 0
    %271 = vmatprep.subr.bf16.mxu0 0
    %272 = vmatpush1.bf16.msra.mxu0 0
    %273 = vmatprep.subr.bf16.mxu0 0
    %274 = vmatpush1.bf16.msra.mxu0 0
    %275 = vmatprep.subr.bf16.mxu0 0
    %276 = vmatpush1.bf16.msra.mxu0 0
    %277 = vmatprep.mubr.bf16.mxu0 0
    %278 = vmatmul.mubr.bf16.gmra.mrb[0].mxu0 %v173
    %v279 = vpop.f32.mrb[0].mxu0
    %v280 = vadd.f32 %v195, %v279
    %v281 = vpop.f32.mrb[0].mxu0
    %v282 = vpop.f32.mrb[0].mxu0
    %v283 = vadd.f32 %v195, %v282
    %v284 = vpop.f32.mrb[0].mxu0
    %285 = vdwg.mxu0
    %v286 = vmax.f32 %v280, 0.0
    %v287 = vmax.f32 %v283, 0.0
    %v288 = vpack.c.bf16 %v287, %v286
    %v289 = vld [vmem:[#allocation11] sm:$0xf]
    %v290 = vld [vmem:[#allocation11 + $0x4] sm:$0xf]
    %v291 = vld [vmem:[#allocation11 + $0x8] sm:$0xf]
    %v292 = vld [vmem:[#allocation11 + $0xc] sm:$0xf]
    %v293 = vld [vmem:[#allocation11 + $0x10] sm:$0xf]
    %v294 = vld [vmem:[#allocation11 + $0x14] sm:$0xf]
    %v295 = vld [vmem:[#allocation11 + $0x18] sm:$0xf]
    %v296 = vld [vmem:[#allocation11 + $0x1c] sm:$0xf]
    %v297 = vld [vmem:[#allocation11 + $0x20] sm:$0xf]
    %v298 = vld [vmem:[#allocation11 + $0x24] sm:$0xf]
    %v299 = vld [vmem:[#allocation11 + $0x28] sm:$0xf]
    %v300 = vld [vmem:[#allocation11 + $0x2c] sm:$0xf]
    %v301 = vld [vmem:[#allocation11 + $0x30] sm:$0xf]
    %v302 = vld [vmem:[#allocation11 + $0x34] sm:$0xf]
    %v303 = vld [vmem:[#allocation11 + $0x38] sm:$0xf]
    %v304 = vld [vmem:[#allocation11 + $0x3c] sm:$0xf]
    %v305 = vld [vmem:[%s7] sm:$0x1]
    %v307 = vlaneseq
    %v308 = vshrl.u32 %v307, 7
    %v309 = vsub.s32 0, %v308
    %v310 = vrot.slane %v305, %v309
    %v328 = vunpack.c.l.b16 %v289
    %v329 = vunpack.c.l.b16 %v290
    %v330 = vunpack.c.l.b16 %v291
    %v331 = vunpack.c.l.b16 %v292
    %v332 = vunpack.c.l.b16 %v293
    %v333 = vunpack.c.l.b16 %v294
    %v334 = vunpack.c.l.b16 %v295
    %v335 = vunpack.c.l.b16 %v296
    %v336 = vunpack.c.l.b16 %v297
    %v337 = vunpack.c.l.b16 %v298
    %v338 = vunpack.c.l.b16 %v299
    %v339 = vunpack.c.l.b16 %v300
    %v340 = vunpack.c.l.b16 %v301
    %v341 = vunpack.c.l.b16 %v302
    %v342 = vunpack.c.l.b16 %v303
    %v343 = vunpack.c.l.b16 %v304
    %v344 = vpack.c.b16 %v329, %v328
    %v345 = vpack.c.b16 %v331, %v330
    %v346 = vpack.c.b16 %v333, %v332
    %v347 = vpack.c.b16 %v335, %v334
    %v348 = vpack.c.b16 %v337, %v336
    %v349 = vpack.c.b16 %v339, %v338
    %v350 = vpack.c.b16 %v341, %v340
    %v351 = vpack.c.b16 %v343, %v342
    %360 = vmatprep.subr.bf16.mxu0 0
    %361 = vmatpush1.bf16.msra.mxu0 %v344
    %362 = vmatprep.subr.bf16.mxu0 0
    %363 = vmatpush1.bf16.msra.mxu0 %v345
    %364 = vmatprep.subr.bf16.mxu0 0
    %365 = vmatpush1.bf16.msra.mxu0 %v346
    %366 = vmatprep.subr.bf16.mxu0 0
    %367 = vmatpush1.bf16.msra.mxu0 %v347
    %368 = vmatprep.subr.bf16.mxu0 0
    %369 = vmatpush1.bf16.msra.mxu0 %v348
    %370 = vmatprep.subr.bf16.mxu0 0
    %371 = vmatpush1.bf16.msra.mxu0 %v349
    %372 = vmatprep.subr.bf16.mxu0 0
    %373 = vmatpush1.bf16.msra.mxu0 %v350
    %374 = vmatprep.subr.bf16.mxu0 0
    %375 = vmatpush1.bf16.msra.mxu0 %v351
    %376 = vmatprep.subr.bf16.mxu0 0
    %377 = vmatpush1.bf16.msra.mxu0 0
    %378 = vmatprep.subr.bf16.mxu0 0
    %379 = vmatpush1.bf16.msra.mxu0 0
    %380 = vmatprep.subr.bf16.mxu0 0
    %381 = vmatpush1.bf16.msra.mxu0 0
    %382 = vmatprep.subr.bf16.mxu0 0
    %383 = vmatpush1.bf16.msra.mxu0 0
    %384 = vmatprep.subr.bf16.mxu0 0
    %385 = vmatpush1.bf16.msra.mxu0 0
    %386 = vmatprep.subr.bf16.mxu0 0
    %387 = vmatpush1.bf16.msra.mxu0 0
    %388 = vmatprep.subr.bf16.mxu0 0
    %389 = vmatpush1.bf16.msra.mxu0 0
    %390 = vmatprep.subr.bf16.mxu0 0
    %391 = vmatpush1.bf16.msra.mxu0 0
    %392 = vmatprep.mubr.bf16.mxu0 0
    %393 = vmatmul.mubr.bf16.gmra.mrb[0].mxu0 %v288
    %v394 = vpop.f32.mrb[0].mxu0
    %v395 = vadd.f32 %v310, %v394
    %v396 = vpop.f32.mrb[0].mxu0
    %v397 = vpop.f32.mrb[0].mxu0
    %v398 = vadd.f32 %v310, %v397
    %v399 = vpop.f32.mrb[0].mxu0
    %400 = vdwg.mxu0
    %v401 = vmax.f32 %v395, 0.0
    %v402 = vmax.f32 %v398, 0.0
    %v403 = vpack.c.bf16 %v402, %v401
    %v404 = vld [vmem:[#allocation13] sm:$0xf]
    %v405 = vld [vmem:[#allocation13 + $0x4] sm:$0xf]
    %v406 = vld [vmem:[#allocation13 + $0x8] sm:$0xf]
    %v407 = vld [vmem:[#allocation13 + $0xc] sm:$0xf]
    %v408 = vld [vmem:[#allocation13 + $0x10] sm:$0xf]
    %v409 = vld [vmem:[#allocation13 + $0x14] sm:$0xf]
    %v410 = vld [vmem:[#allocation13 + $0x18] sm:$0xf]
    %v411 = vld [vmem:[#allocation13 + $0x1c] sm:$0xf]
    %v412 = vld [vmem:[#allocation13 + $0x20] sm:$0xf]
    %v413 = vld [vmem:[#allocation13 + $0x24] sm:$0xf]
    %v414 = vld [vmem:[#allocation13 + $0x28] sm:$0xf]
    %v415 = vld [vmem:[#allocation13 + $0x2c] sm:$0xf]
    %v416 = vld [vmem:[#allocation13 + $0x30] sm:$0xf]
    %v417 = vld [vmem:[#allocation13 + $0x34] sm:$0xf]
    %v418 = vld [vmem:[#allocation13 + $0x38] sm:$0xf]
    %v419 = vld [vmem:[#allocation13 + $0x3c] sm:$0xf]
    %v420 = vld [vmem:[%s9] sm:$0x1]
    %v422 = vlaneseq
    %v423 = vshrl.u32 %v422, 7
    %v424 = vsub.s32 0, %v423
    %v425 = vrot.slane %v420, %v424
    %v443 = vunpack.c.l.b16 %v404
    %v444 = vunpack.c.l.b16 %v405
    %v445 = vunpack.c.l.b16 %v406
    %v446 = vunpack.c.l.b16 %v407
    %v447 = vunpack.c.l.b16 %v408
    %v448 = vunpack.c.l.b16 %v409
    %v449 = vunpack.c.l.b16 %v410
    %v450 = vunpack.c.l.b16 %v411
    %v451 = vunpack.c.l.b16 %v412
    %v452 = vunpack.c.l.b16 %v413
    %v453 = vunpack.c.l.b16 %v414
    %v454 = vunpack.c.l.b16 %v415
    %v455 = vunpack.c.l.b16 %v416
    %v456 = vunpack.c.l.b16 %v417
    %v457 = vunpack.c.l.b16 %v418
    %v458 = vunpack.c.l.b16 %v419
    %v459 = vpack.c.b16 %v444, %v443
    %v460 = vpack.c.b16 %v446, %v445
    %v461 = vpack.c.b16 %v448, %v447
    %v462 = vpack.c.b16 %v450, %v449
    %v463 = vpack.c.b16 %v452, %v451
    %v464 = vpack.c.b16 %v454, %v453
    %v465 = vpack.c.b16 %v456, %v455
    %v466 = vpack.c.b16 %v458, %v457
    %475 = vmatprep.subr.bf16.mxu0 0
    %476 = vmatpush1.bf16.msra.mxu0 %v459
    %477 = vmatprep.subr.bf16.mxu0 0
    %478 = vmatpush1.bf16.msra.mxu0 %v460
    %479 = vmatprep.subr.bf16.mxu0 0
    %480 = vmatpush1.bf16.msra.mxu0 %v461
    %481 = vmatprep.subr.bf16.mxu0 0
    %482 = vmatpush1.bf16.msra.mxu0 %v462
    %483 = vmatprep.subr.bf16.mxu0 0
    %484 = vmatpush1.bf16.msra.mxu0 %v463
    %485 = vmatprep.subr.bf16.mxu0 0
    %486 = vmatpush1.bf16.msra.mxu0 %v464
    %487 = vmatprep.subr.bf16.mxu0 0
    %488 = vmatpush1.bf16.msra.mxu0 %v465
    %489 = vmatprep.subr.bf16.mxu0 0
    %490 = vmatpush1.bf16.msra.mxu0 %v466
    %491 = vmatprep.subr.bf16.mxu0 0
    %492 = vmatpush1.bf16.msra.mxu0 0
    %493 = vmatprep.subr.bf16.mxu0 0
    %494 = vmatpush1.bf16.msra.mxu0 0
    %495 = vmatprep.subr.bf16.mxu0 0
    %496 = vmatpush1.bf16.msra.mxu0 0
    %497 = vmatprep.subr.bf16.mxu0 0
    %498 = vmatpush1.bf16.msra.mxu0 0
    %499 = vmatprep.subr.bf16.mxu0 0
    %500 = vmatpush1.bf16.msra.mxu0 0
    %501 = vmatprep.subr.bf16.mxu0 0
    %502 = vmatpush1.bf16.msra.mxu0 0
    %503 = vmatprep.subr.bf16.mxu0 0
    %504 = vmatpush1.bf16.msra.mxu0 0
    %505 = vmatprep.subr.bf16.mxu0 0
    %506 = vmatpush1.bf16.msra.mxu0 0
    %507 = vmatprep.mubr.bf16.mxu0 0
    %508 = vmatmul.mubr.bf16.gmra.mrb[0].mxu0 %v403
    %v509 = vpop.f32.mrb[0].mxu0
    %v510 = vadd.f32 %v425, %v509
    %v511 = vpop.f32.mrb[0].mxu0
    %v512 = vpop.f32.mrb[0].mxu0
    %v513 = vadd.f32 %v425, %v512
    %v514 = vpop.f32.mrb[0].mxu0
    %515 = vdwg.mxu0
    %v516 = vpack.c.bf16 %v513, %v510
    %v518 = vunpack.c.l.b16 %v516
    %v519 = vunpack.c.h.b16 %v516
    %v520 = vpack.c.b16 %v518, %v518
    %v521 = vpack.c.b16 %v519, %v519
    %524 = vst [vmem:[#allocation14] sm:$0xf] %v520
    %525 = vst [vmem:[#allocation14 + $0x4] sm:$0xf] %v521
    // Predicated region
    $region70: #{tpu_custom_call.1} parent=1 // pred_check
      _
    $region71: #{tpu_custom_call.1} parent=1 // pred_check_branch
      %527 = sbr.rel (0) target = $region73
    $region72: #{tpu_custom_call.1} parent=1 // pred_region
      %s529 = ssub.s32 128, 128
      %530 = vsyncadd [#allocation4], %s529
      %s531 = sshll.u32 [#allocation14], 4
      %s532 = int_to_ptr.vmem [resolvable:$true] %s531
      %537 = dma.vmem_to_hbm [thread:$0]  %s532, 128, %s10, [#allocation4], 64, 64, 4
    $region73: #{tpu_custom_call.1} parent=1 // pred_fallthru
      _
    // Predicated region
    $region74: #{tpu_custom_call.1} parent=1 // pred_check
      _
    $region75: #{tpu_custom_call.1} parent=1 // pred_check_branch
      %539 = sbr.rel (0) target = $region77
    $region76: #{tpu_custom_call.1} parent=1 // pred_region
      %540 = dma.done [#allocation4], 128
    $region77: #{tpu_custom_call.1} parent=1 // pred_fallthru
      _
    %541 = vsyncpa [#allocation3], 1
    %542 = vsyncpa [#allocation6], 1
    %543 = vsyncpa [#allocation9], 1
    %544 = vsyncpa [#allocation12], 1
    %545 = vsyncpa [#allocation4], 1

</llo_original>
